<compile_context>
chip_gen: v6e
topology: v6e:2x2x1
jax: 0.10.0
libtpu: 0.0.40
codegen_flags: <defaults>
</compile_context>

<pallas_src>
import functools

import numpy as np
import jax
import jax.numpy as jnp
from jax import lax
from jax.experimental import pallas as pl
from jax.experimental.pallas import tpu as pltpu


def _rev_bottleneck_kernel(x_ref, w3_ref, w12_ref, o_ref, *, H, W):
    # x_ref  : (C4, H*W)     one image, channels x flattened spatial (lane-dense), bf16
    # w3_ref : (P, C4)       conv3 (1x1 transposed)            h = w3 @ x
    # w12_ref: (Cout, 9*P)   conv1 folded into the 9 conv2 taps (tap-major columns)
    # o_ref  : (Cout, H*W)
    HW = H * W
    x = x_ref[...]                                                     # (C4, HW) bf16

    # conv3: 1x1 transposed conv == channel matmul; spatial stays on the lane axis.
    h = jnp.dot(w3_ref[...], x, preferred_element_type=jnp.float32)    # (P, HW) f32

    # Boundary masks from the flattened spatial index (computed once, VPU only).
    col = lax.broadcasted_iota(jnp.int32, (1, HW), 1)
    xpos = col % W                                                     # x coord in row
    all_ok = col >= 0                                                  # all-true
    row_ok = {-1: col >= W, 0: all_ok, 1: col < HW - W}
    col_ok = {-1: xpos >= 1, 0: all_ok, 1: xpos <= W - 2}

    # conv2+conv1 fused: 9 lane-rolled, boundary-masked taps stacked along the
    # contraction axis -> single (Cout, 9P) x (9P, HW) matmul.
    parts = []
    for kh in range(3):
        for kw in range(3):
            dh, dw = kh - 1, kw - 1
            shift = (-(dh * W + dw)) % HW
            tap = pltpu.roll(h, shift, axis=1) if shift else h  # tap[:,s]=h[:,s+dh*W+dw]
            if dh != 0 or dw != 0:
                mask = jnp.logical_and(row_ok[dh], col_ok[dw])
                tap = jnp.where(mask, tap, 0.0)     # zero halo / kill row wrap-around
            parts.append(tap)
    taps = jnp.concatenate(parts, axis=0).astype(jnp.bfloat16)          # (9P, HW)

    out = jnp.dot(w12_ref[...], taps, preferred_element_type=jnp.float32)  # (Cout, HW)
    o_ref[...] = out.astype(o_ref.dtype)


def rev_bottleneck_forward(x_nchw, w_conv1, w_conv2, w_conv3):
    """RevBottleneck.forward: conv3 (1x1T) -> conv2 (3x3T, pad=1) -> conv1 (1x1T).

    x_nchw : (N, planes*4, H, W), NCHW.
    Weights in PyTorch ConvTranspose2d layout (C_in, C_out, kH, kW), bias-free.
    Returns bf16 (HBM-resident activation streams kept in bf16; accumulation is f32).
    """
    # TODO(synk): only the default stride=1 / dilation=1 configuration is implemented
    # (stride>1 transposed-conv upsampling would need input-dilation handling).
    N, C4, H, W = x_nchw.shape
    P = w_conv3.shape[1]
    Cout = w_conv1.shape[1]
    HW = H * W

    dt = jnp.bfloat16
    # Free reshape of contiguous dims + dtype cast -- no transpose / pad HBM passes.
    x_flat = x_nchw.reshape(N, C4, HW).astype(dt)

    # Effective regular-conv weights (output channels leading), with conv1 folded
    # into the nine conv2 taps: w12[t] = w1 @ w2[t]  ->  (Cout, 9*P), tap-major cols.
    w3_k = jnp.transpose(w_conv3[:, :, 0, 0], (1, 0)).astype(dt)          # (P, C4)
    w2_k = jnp.transpose(jnp.flip(w_conv2, axis=(2, 3)), (2, 3, 1, 0))    # (3,3,co,ci)
    w2_k = w2_k.reshape(9, P, P)                                          # [tap,co,ci]
    w1_k = jnp.transpose(w_conv1[:, :, 0, 0], (1, 0))                     # (Cout, P)
    w12 = jnp.einsum("op,tpq->toq", w1_k, w2_k)                           # (9,Cout,P)
    w12 = jnp.transpose(w12, (1, 0, 2)).reshape(Cout, 9 * P).astype(dt)   # (Cout,9P)

    # TODO(synk): for production stages where H*W is not a multiple of 128 (14x14,
    # 7x7) zero-pad the lane axis to a 128 multiple, and for huge HW / tiny N add a
    # second grid axis over row strips with a one-row halo (keeps each of v7x's two
    # TensorCores pipelining within its 64 MiB VMEM).
    kernel = functools.partial(_rev_bottleneck_kernel, H=H, W=W)
    out_flat = pl.pallas_call(
        kernel,
        out_shape=jax.ShapeDtypeStruct((N, Cout, HW), dt),
        grid=(N,),
        in_specs=[
            pl.BlockSpec((pl.Squeezed(), C4, HW), lambda n: (n, 0, 0)),
            pl.BlockSpec((P, C4), lambda n: (0, 0)),
            pl.BlockSpec((Cout, 9 * P), lambda n: (0, 0)),
        ],
        out_specs=pl.BlockSpec((pl.Squeezed(), Cout, HW), lambda n: (n, 0, 0)),
        compiler_params=pltpu.CompilerParams(
            dimension_semantics=("parallel",),
            vmem_limit_bytes=32 * 1024 * 1024,
        ),
    )(x_flat, w3_k, w12)
    return out_flat.reshape(N, Cout, H, W)


def ref_forward(x_nchw, w_conv1, w_conv2, w_conv3):
    """Pure-JAX f32 reference: transposed convs rewritten as regular convs (NCHW, OIHW)."""
    def conv(x, w, pad):
        return jax.lax.conv_general_dilated(
            x, w, window_strides=(1, 1), padding=[(pad, pad), (pad, pad)],
            dimension_numbers=("NCHW", "OIHW", "NCHW"))
    w3r = jnp.transpose(w_conv3, (1, 0, 2, 3))                        # (P, C4, 1, 1)
    w2r = jnp.transpose(jnp.flip(w_conv2, (2, 3)), (1, 0, 2, 3))      # (P, P, 3, 3)
    w1r = jnp.transpose(w_conv1, (1, 0, 2, 3))                        # (Cout, P, 1, 1)
    h = conv(x_nchw, w3r, 0)
    h = conv(h, w2r, 1)
    return conv(h, w1r, 0)


if __name__ == "__main__":
    inplanes, planes = 16, 8      # RevBottleneck(inplanes=16, planes=8), expansion=4
    # N=8 gives the software pipeline 8 grid steps (4 per TensorCore on v7x megacore)
    # instead of 2, so per-step overhead / DMA prologue is amortised even at demo size.
    N, H, W = 8, 16, 16

    key = jax.random.PRNGKey(0)
    k1, k2, k3, kx = jax.random.split(key, 4)
    # ConvTranspose2d weight layout: (in_channels, out_channels, kH, kW)
    w_conv1 = 0.1 * jax.random.normal(k1, (planes, inplanes, 1, 1), jnp.float32)
    w_conv2 = 0.1 * jax.random.normal(k2, (planes, planes, 3, 3), jnp.float32)
    w_conv3 = 0.1 * jax.random.normal(k3, (planes * 4, planes, 1, 1), jnp.float32)
    x = jax.random.normal(kx, (N, planes * 4, H, W), jnp.float32)

    # Quantise inputs to bf16 once so the bf16 kernel and the f32 reference see
    # identical data (remaining diff = f32-accumulated bf16 matmuls vs pure f32).
    q = lambda a: a.astype(jnp.bfloat16).astype(jnp.float32)
    xq, w1q, w2q, w3q = q(x), q(w_conv1), q(w_conv2), q(w_conv3)

    out = jax.block_until_ready(rev_bottleneck_forward(xq, w1q, w2q, w3q))
    ref = jax.block_until_ready(ref_forward(xq, w1q, w2q, w3q))

    assert out.shape == (N, inplanes, H, W), out.shape
    out_f32 = np.asarray(out.astype(jnp.float32))
    np.testing.assert_allclose(out_f32, np.asarray(ref), rtol=3e-2, atol=1e-2)
    print("KERNEL_OK")
</pallas_src>

<mosaic_0001>
module attributes {stable_mosaic.version = 11 : i64} {
  func.func @_rev_bottleneck_kernel(%arg0: i32, %arg1: memref<1x32x256xbf16, #tpu.memory_space<vmem>>, %arg2: memref<8x32xbf16, #tpu.memory_space<vmem>>, %arg3: memref<16x72xbf16, #tpu.memory_space<vmem>>, %arg4: memref<1x16x256xbf16, #tpu.memory_space<vmem>>) attributes {dimension_semantics = [#tpu.dimension_semantics<parallel>], iteration_bounds = array<i64: 8>, scalar_prefetch = 0 : i64, scratch_operands = 0 : i64, tpu.core_type = #tpu.core_type<tc>, window_params = [{transform_indices = @transform_0, window_bounds = array<i64: 1, 32, 256>}, {pipeline_mode = #tpu.pipeline_mode<synchronous>, transform_indices = @transform_1, window_bounds = array<i64: 8, 32>}, {pipeline_mode = #tpu.pipeline_mode<synchronous>, transform_indices = @transform_2, window_bounds = array<i64: 16, 72>}, {transform_indices = @transform_3, window_bounds = array<i64: 1, 16, 256>}]} {
    %c0 = arith.constant 0 : index
    %c0_0 = arith.constant 0 : index
    %c0_1 = arith.constant 0 : index
    %0 = vector.load %arg1[%c0, %c0_0, %c0_1] : memref<1x32x256xbf16, #tpu.memory_space<vmem>>, vector<1x32x256xbf16>
    %1 = vector.shape_cast %0 : vector<1x32x256xbf16> to vector<32x256xbf16>
    %c0_2 = arith.constant 0 : index
    %c0_3 = arith.constant 0 : index
    %2 = vector.load %arg2[%c0_2, %c0_3] : memref<8x32xbf16, #tpu.memory_space<vmem>>, vector<8x32xbf16>
    %cst = arith.constant dense<0.000000e+00> : vector<8x256xf32>
    %3 = tpu.matmul %2, %1, %cst {dimension_numbers = #tpu.dot_dimension_numbers<[1], [0], [0], [1], [0, 0, 1, 1], [], []>} : vector<8x32xbf16>, vector<32x256xbf16>, vector<8x256xf32> -> vector<8x256xf32>
    %4 = tpu.iota {dimensions = array<i32: 1>} : vector<1x256xi32>
    %c16_i32 = arith.constant 16 : i32
    %c0_i32 = arith.constant 0 : i32
    %5 = arith.cmpi eq, %c16_i32, %c0_i32 : i32
    %c1_i32 = arith.constant 1 : i32
    %6 = arith.select %5, %c1_i32, %c16_i32 : i32
    %7 = vector.broadcast %6 : i32 to vector<1x256xi32>
    %8 = arith.remsi %4, %7 : vector<1x256xi32>
    %c0_i32_4 = arith.constant 0 : i32
    %9 = vector.broadcast %c0_i32_4 : i32 to vector<1x256xi32>
    %10 = arith.cmpi ne, %8, %9 : vector<1x256xi32>
    %c0_i32_5 = arith.constant 0 : i32
    %11 = vector.broadcast %c0_i32_5 : i32 to vector<1x256xi32>
    %12 = arith.cmpi slt, %8, %11 : vector<1x256xi32>
    %c0_i32_6 = arith.constant 0 : i32
    %13 = arith.cmpi slt, %6, %c0_i32_6 : i32
    %14 = vector.broadcast %13 : i1 to vector<1x256xi1>
    %15 = vector.broadcast %14 : vector<1x256xi1> to vector<1x256xi1>
    %16 = arith.xori %12, %15 : vector<1x256xi1>
    %17 = arith.andi %16, %10 : vector<1x256xi1>
    %18 = vector.broadcast %6 : i32 to vector<1x256xi32>
    %19 = arith.addi %8, %18 : vector<1x256xi32>
    %20 = arith.select %17, %19, %8 : vector<1x256xi1>, vector<1x256xi32>
    %c0_i32_7 = arith.constant 0 : i32
    %21 = vector.broadcast %c0_i32_7 : i32 to vector<1x256xi32>
    %22 = arith.cmpi sge, %4, %21 : vector<1x256xi32>
    %c16_i32_8 = arith.constant 16 : i32
    %23 = vector.broadcast %c16_i32_8 : i32 to vector<1x256xi32>
    %24 = arith.cmpi sge, %4, %23 : vector<1x256xi32>
    %c240_i32 = arith.constant 240 : i32
    %25 = vector.broadcast %c240_i32 : i32 to vector<1x256xi32>
    %26 = arith.cmpi slt, %4, %25 : vector<1x256xi32>
    %c1_i32_9 = arith.constant 1 : i32
    %27 = vector.broadcast %c1_i32_9 : i32 to vector<1x256xi32>
    %28 = arith.cmpi sge, %20, %27 : vector<1x256xi32>
    %c14_i32 = arith.constant 14 : i32
    %29 = vector.broadcast %c14_i32 : i32 to vector<1x256xi32>
    %30 = arith.cmpi sle, %20, %29 : vector<1x256xi32>
    %c17_i32 = arith.constant 17 : i32
    %31 = tpu.dynamic_rotate %3 by %c17_i32 dim 1 : vector<8x256xf32>, i32 -> vector<8x256xf32>
    %32 = arith.andi %24, %28 : vector<1x256xi1>
    %cst_10 = arith.constant 0.000000e+00 : f32
    %33 = vector.shape_cast %32 : vector<1x256xi1> to vector<1x256xi1>
    %34 = vector.broadcast %33 : vector<1x256xi1> to vector<8x256xi1>
    %35 = vector.broadcast %cst_10 : f32 to vector<8x256xf32>
    %36 = arith.select %34, %31, %35 : vector<8x256xi1>, vector<8x256xf32>
    %c16_i32_11 = arith.constant 16 : i32
    %37 = tpu.dynamic_rotate %3 by %c16_i32_11 dim 1 : vector<8x256xf32>, i32 -> vector<8x256xf32>
    %38 = arith.andi %24, %22 : vector<1x256xi1>
    %cst_12 = arith.constant 0.000000e+00 : f32
    %39 = vector.shape_cast %38 : vector<1x256xi1> to vector<1x256xi1>
    %40 = vector.broadcast %39 : vector<1x256xi1> to vector<8x256xi1>
    %41 = vector.broadcast %cst_12 : f32 to vector<8x256xf32>
    %42 = arith.select %40, %37, %41 : vector<8x256xi1>, vector<8x256xf32>
    %c15_i32 = arith.constant 15 : i32
    %43 = tpu.dynamic_rotate %3 by %c15_i32 dim 1 : vector<8x256xf32>, i32 -> vector<8x256xf32>
    %44 = arith.andi %24, %30 : vector<1x256xi1>
    %cst_13 = arith.constant 0.000000e+00 : f32
    %45 = vector.shape_cast %44 : vector<1x256xi1> to vector<1x256xi1>
    %46 = vector.broadcast %45 : vector<1x256xi1> to vector<8x256xi1>
    %47 = vector.broadcast %cst_13 : f32 to vector<8x256xf32>
    %48 = arith.select %46, %43, %47 : vector<8x256xi1>, vector<8x256xf32>
    %c1_i32_14 = arith.constant 1 : i32
    %49 = tpu.dynamic_rotate %3 by %c1_i32_14 dim 1 : vector<8x256xf32>, i32 -> vector<8x256xf32>
    %50 = arith.andi %22, %28 : vector<1x256xi1>
    %cst_15 = arith.constant 0.000000e+00 : f32
    %51 = vector.shape_cast %50 : vector<1x256xi1> to vector<1x256xi1>
    %52 = vector.broadcast %51 : vector<1x256xi1> to vector<8x256xi1>
    %53 = vector.broadcast %cst_15 : f32 to vector<8x256xf32>
    %54 = arith.select %52, %49, %53 : vector<8x256xi1>, vector<8x256xf32>
    %c255_i32 = arith.constant 255 : i32
    %55 = tpu.dynamic_rotate %3 by %c255_i32 dim 1 : vector<8x256xf32>, i32 -> vector<8x256xf32>
    %56 = arith.andi %22, %30 : vector<1x256xi1>
    %cst_16 = arith.constant 0.000000e+00 : f32
    %57 = vector.shape_cast %56 : vector<1x256xi1> to vector<1x256xi1>
    %58 = vector.broadcast %57 : vector<1x256xi1> to vector<8x256xi1>
    %59 = vector.broadcast %cst_16 : f32 to vector<8x256xf32>
    %60 = arith.select %58, %55, %59 : vector<8x256xi1>, vector<8x256xf32>
    %c241_i32 = arith.constant 241 : i32
    %61 = tpu.dynamic_rotate %3 by %c241_i32 dim 1 : vector<8x256xf32>, i32 -> vector<8x256xf32>
    %62 = arith.andi %26, %28 : vector<1x256xi1>
    %cst_17 = arith.constant 0.000000e+00 : f32
    %63 = vector.shape_cast %62 : vector<1x256xi1> to vector<1x256xi1>
    %64 = vector.broadcast %63 : vector<1x256xi1> to vector<8x256xi1>
    %65 = vector.broadcast %cst_17 : f32 to vector<8x256xf32>
    %66 = arith.select %64, %61, %65 : vector<8x256xi1>, vector<8x256xf32>
    %c240_i32_18 = arith.constant 240 : i32
    %67 = tpu.dynamic_rotate %3 by %c240_i32_18 dim 1 : vector<8x256xf32>, i32 -> vector<8x256xf32>
    %68 = arith.andi %26, %22 : vector<1x256xi1>
    %cst_19 = arith.constant 0.000000e+00 : f32
    %69 = vector.shape_cast %68 : vector<1x256xi1> to vector<1x256xi1>
    %70 = vector.broadcast %69 : vector<1x256xi1> to vector<8x256xi1>
    %71 = vector.broadcast %cst_19 : f32 to vector<8x256xf32>
    %72 = arith.select %70, %67, %71 : vector<8x256xi1>, vector<8x256xf32>
    %c239_i32 = arith.constant 239 : i32
    %73 = tpu.dynamic_rotate %3 by %c239_i32 dim 1 : vector<8x256xf32>, i32 -> vector<8x256xf32>
    %74 = arith.andi %26, %30 : vector<1x256xi1>
    %cst_20 = arith.constant 0.000000e+00 : f32
    %75 = vector.shape_cast %74 : vector<1x256xi1> to vector<1x256xi1>
    %76 = vector.broadcast %75 : vector<1x256xi1> to vector<8x256xi1>
    %77 = vector.broadcast %cst_20 : f32 to vector<8x256xf32>
    %78 = arith.select %76, %73, %77 : vector<8x256xi1>, vector<8x256xf32>
    %79 = tpu.concatenate %36, %42, %48, %54, %3, %60, %66, %72, %78 in 0 : vector<8x256xf32>, vector<8x256xf32>, vector<8x256xf32>, vector<8x256xf32>, vector<8x256xf32>, vector<8x256xf32>, vector<8x256xf32>, vector<8x256xf32>, vector<8x256xf32> -> vector<72x256xf32>
    %80 = arith.truncf %79 : vector<72x256xf32> to vector<72x256xbf16>
    %c0_21 = arith.constant 0 : index
    %c0_22 = arith.constant 0 : index
    %81 = vector.load %arg3[%c0_21, %c0_22] : memref<16x72xbf16, #tpu.memory_space<vmem>>, vector<16x72xbf16>
    %cst_23 = arith.constant dense<0.000000e+00> : vector<16x256xf32>
    %82 = tpu.matmul %81, %80, %cst_23 {dimension_numbers = #tpu.dot_dimension_numbers<[1], [0], [0], [1], [0, 0, 1, 1], [], []>} : vector<16x72xbf16>, vector<72x256xbf16>, vector<16x256xf32> -> vector<16x256xf32>
    %83 = arith.truncf %82 : vector<16x256xf32> to vector<16x256xbf16>
    %c0_24 = arith.constant 0 : index
    %c0_25 = arith.constant 0 : index
    %c0_26 = arith.constant 0 : index
    %84 = vector.load %arg4[%c0_24, %c0_25, %c0_26] : memref<1x16x256xbf16, #tpu.memory_space<vmem>>, vector<1x16x256xbf16>
    %85 = vector.shape_cast %84 : vector<1x16x256xbf16> to vector<16x256xbf16>
    %86 = vector.shape_cast %83 : vector<16x256xbf16> to vector<1x16x256xbf16>
    tpu.vector_store %arg4[%c0_24, %c0_25, %c0_26], %86 {strides = array<i32>} : memref<1x16x256xbf16, #tpu.memory_space<vmem>>, vector<1x16x256xbf16>,
    return
  }
  func.func @transform_0(%arg0: i32) -> (i32, i32, i32) {
    %c0_i32 = arith.constant 0 : i32
    %c0_i32_0 = arith.constant 0 : i32
    %c0_i32_1 = arith.constant 0 : i32
    return %arg0, %c0_i32, %c0_i32_0 : i32, i32, i32
  }
  func.func @transform_1(%arg0: i32) -> (i32, i32) {
    %c0_i32 = arith.constant 0 : i32
    %c0_i32_0 = arith.constant 0 : i32
    %c0_i32_1 = arith.constant 0 : i32
    return %c0_i32, %c0_i32_0 : i32, i32
  }
  func.func @transform_2(%arg0: i32) -> (i32, i32) {
    %c0_i32 = arith.constant 0 : i32
    %c0_i32_0 = arith.constant 0 : i32
    %c0_i32_1 = arith.constant 0 : i32
    return %c0_i32, %c0_i32_0 : i32, i32
  }
  func.func @transform_3(%arg0: i32) -> (i32, i32, i32) {
    %c0_i32 = arith.constant 0 : i32
    %c0_i32_0 = arith.constant 0 : i32
    %c0_i32_1 = arith.constant 0 : i32
    return %arg0, %c0_i32, %c0_i32_0 : i32, i32, i32
  }
}

</mosaic_0001>

<llo_original>
// kernel: tpu_custom_call.1
$region0: #{tpu_custom_call.1}
  #allocation0 [shape = 'u32[]', space=smem, size = 0x4, offset = 0x4, fixed_abs, tag = 'smem constant byte address 0x4 - core index']
  #allocation1 [shape = 'u32[144,128]{1,0:T(1,128)}', space=vmem, size = 0x12000, scoped, tag = 'internal scratch']
  %s0 = inlined_call_operand.hbm [shape: bf16[8,32,256], index: 0, kind: input, shape index: {}]
  %s1 = inlined_call_operand.hbm [shape: bf16[8,32], index: 1, kind: input, shape index: {}]
  %s2 = inlined_call_operand.hbm [shape: bf16[16,72], index: 2, kind: input, shape index: {}]
  %s3 = inlined_call_operand.hbm [shape: bf16[8,16,256], index: 3, kind: output, shape index: {}]
  %s4 = sld [smem:[#allocation0]]
  $region57: #{tpu_custom_call.1} parent=0
    _
  %s6 = ssub.s32 1, %s4
  %s7 = scalar_select 0, %s6, %s4
  $region1: #{tpu_custom_call.1} parent=0
    #allocation2 [shape = 'u8[32768]{0}', space=vmem, size = 0x8000, scoped, tag = 'input window, operand 0']
    #allocation3 [shape = 's32[2]{0}', space=sflag, size = 0x8, scoped, tag = 'scoped memory for tpu_custom_call.1']
    #allocation4 [shape = 's32[2]{0}', space=sflag, size = 0x8, scoped, tag = 'scoped memory for tpu_custom_call.1']
    #allocation5 [shape = 'u8[2048]{0}', space=vmem, size = 0x800, scoped, tag = 'input window, operand 1, single buffered']
    #allocation6 [shape = 's32[1]{0}', space=sflag, size = 0x4, scoped, tag = 'scoped memory for tpu_custom_call.1']
    #allocation7 [shape = 'u8[4096]{0}', space=vmem, size = 0x1000, scoped, tag = 'input window, operand 2, single buffered']
    #allocation8 [shape = 'u8[16384]{0}', space=vmem, size = 0x4000, scoped, tag = 'output window, operand 0']
    %8 = vsyncpa [#allocation3], 0
    %s9 = scalar_lea.sflag [#allocation3], 1
    %10 = vsyncpa %s9, 0
    %11 = vsyncpa [#allocation6], 0
    %12 = vsyncpa [#allocation4], 0
    %s13 = scalar_lea.sflag [#allocation4], 1
    %14 = vsyncpa %s13, 0
    loop: start=0, step=1, limit=10
    $region2: #{tpu_custom_call.1} parent=1 // loop_pre_header
      _
    $region3: #{tpu_custom_call.1} parent=1 // loop_header
      %s16 = sphi 0, %s20
      %p17 = scmp.ge.s32.totalorder %s16, 10
      %s26 = sphi 0, %s28
      %s29 = sphi 0, %s26
      %s30 = sphi 0, %s29
      %s46 = sphi 0, %s30
      %s50 = sphi 0, %s50
      %s52 = sphi 0, %s50
      %s53 = sphi 0, %s52
      %s67 = sphi 0, %s53
      %s71 = sphi 0, %s71
      %s73 = sphi 0, %s71
      %s74 = sphi 0, %s73
      %s88 = sphi 0, %s74
      %s94 = sphi 0, %s96
      %s97 = sphi 0, %s94
      %s98 = sphi 0, %s97
      %s114 = sphi 0, %s98
    $region4: #{tpu_custom_call.1} parent=1 // loop_header_branch
      %19 = sbr.rel (%p17) target = $region8
    $region5: #{tpu_custom_call.1} parent=1 // loop_body
      %s21 = ssub.s32 %s16, 1
      %s22 = ssub.s32 %s16, 2
      %s23 = sadd.s32 %s16, 1
      %s24 = ssub.s32 %s16, %s23
      %p25 = scmp.eq.s32.totalorder %s24, 0
      %s27 = sadd.s32 %s26, 1
      %s28 = scalar_select %p25, %s26, %s27
      %p31 = pneg %p25
      %p32 = scmp.eq.s32.totalorder %s16, 7
      %p33 = por %p31, %p32
      %p34 = scmp.ne.s32.totalorder %s26, %s29
      %p35 = scmp.eq.s32.totalorder %s16, 0
      %p36 = por %p34, %p35
      %p37 = scmp.ne.s32.totalorder %s26, %s29
      %p38 = scmp.eq.s32.totalorder %s21, 7
      %p39 = por %p37, %p38
      %p40 = scmp.ne.s32.totalorder %s29, %s30
      %p41 = scmp.eq.s32.totalorder %s21, 0
      %p42 = por %p40, %p41
      %p43 = scmp.ne.s32.totalorder %s29, %s30
      %p44 = scmp.eq.s32.totalorder %s22, 7
      %p45 = por %p43, %p44
      %p47 = scmp.ne.s32.totalorder %s30, %s46
      %p48 = scmp.eq.s32.totalorder %s22, 0
      %p49 = por %p47, %p48
      %s51 = sadd.s32 %s50, 1
      %p54 = scmp.eq.s32.totalorder %s16, 7
      %p55 = scmp.ne.s32.totalorder %s50, %s52
      %p56 = scmp.eq.s32.totalorder %s16, 0
      %p57 = por %p55, %p56
      %p58 = scmp.ne.s32.totalorder %s50, %s52
      %p59 = scmp.eq.s32.totalorder %s21, 7
      %p60 = por %p58, %p59
      %p61 = scmp.ne.s32.totalorder %s52, %s53
      %p62 = scmp.eq.s32.totalorder %s21, 0
      %p63 = por %p61, %p62
      %p64 = scmp.ne.s32.totalorder %s52, %s53
      %p65 = scmp.eq.s32.totalorder %s22, 7
      %p66 = por %p64, %p65
      %p68 = scmp.ne.s32.totalorder %s53, %s67
      %p69 = scmp.eq.s32.totalorder %s22, 0
      %p70 = por %p68, %p69
      %s72 = sadd.s32 %s71, 1
      %p75 = scmp.eq.s32.totalorder %s16, 7
      %p76 = scmp.ne.s32.totalorder %s71, %s73
      %p77 = scmp.eq.s32.totalorder %s16, 0
      %p78 = por %p76, %p77
      %p79 = scmp.ne.s32.totalorder %s71, %s73
      %p80 = scmp.eq.s32.totalorder %s21, 7
      %p81 = por %p79, %p80
      %p82 = scmp.ne.s32.totalorder %s73, %s74
      %p83 = scmp.eq.s32.totalorder %s21, 0
      %p84 = por %p82, %p83
      %p85 = scmp.ne.s32.totalorder %s73, %s74
      %p86 = scmp.eq.s32.totalorder %s22, 7
      %p87 = por %p85, %p86
      %p89 = scmp.ne.s32.totalorder %s74, %s88
      %p90 = scmp.eq.s32.totalorder %s22, 0
      %p91 = por %p89, %p90
      %s92 = ssub.s32 %s16, %s23
      %p93 = scmp.eq.s32.totalorder %s92, 0
      %s95 = sadd.s32 %s94, 1
      %s96 = scalar_select %p93, %s94, %s95
      %p99 = pneg %p93
      %p100 = scmp.eq.s32.totalorder %s16, 7
      %p101 = por %p99, %p100
      %p102 = scmp.ne.s32.totalorder %s94, %s97
      %p103 = scmp.eq.s32.totalorder %s16, 0
      %p104 = por %p102, %p103
      %p105 = scmp.ne.s32.totalorder %s94, %s97
      %p106 = scmp.eq.s32.totalorder %s21, 7
      %p107 = por %p105, %p106
      %p108 = scmp.ne.s32.totalorder %s97, %s98
      %p109 = scmp.eq.s32.totalorder %s21, 0
      %p110 = por %p108, %p109
      %p111 = scmp.ne.s32.totalorder %s97, %s98
      %p112 = scmp.eq.s32.totalorder %s22, 7
      %p113 = por %p111, %p112
      %p115 = scmp.ne.s32.totalorder %s98, %s114
      %p116 = scmp.eq.s32.totalorder %s22, 0
      %p117 = por %p115, %p116
      %p118 = scmp.le.s32.totalorder 1, %s16
      %p119 = scmp.lt.s32.totalorder %s16, 9
      %p120 = pnand %p118, %p119
      %p121 = pneg %p120
      // Predicated region
      $region9: #{tpu_custom_call.1} parent=5 // pred_check
        _
      $region10: #{tpu_custom_call.1} parent=5 // pred_check_branch
        %123 = sbr.rel (%p120) target = $region12
      $region11: #{tpu_custom_call.1} parent=5 // pred_region
        %s124 = ssub.s32 %s16, 1
        // Predicated region
        $region13: #{tpu_custom_call.1} parent=11 // pred_check
          %p125 = pneg %p63
        $region14: #{tpu_custom_call.1} parent=11 // pred_check_branch
          %127 = sbr.rel (%p125) target = $region16
        $region15: #{tpu_custom_call.1} parent=11 // pred_region
          %s129 = ssub.s32 64, 64
          %130 = vsyncadd [#allocation6], %s129
          %s132 = sshll.u32 [#allocation5], 4
          %s133 = int_to_ptr.vmem [resolvable:$true] %s132
          %135 = dma.hbm_to_vmem [thread:$0]  %s1, 64, %s133, [#allocation6]
        $region16: #{tpu_custom_call.1} parent=11 // pred_fallthru
          _
        // Predicated region
        $region17: #{tpu_custom_call.1} parent=11 // pred_check
          %p136 = pneg %p84
        $region18: #{tpu_custom_call.1} parent=11 // pred_check_branch
          %138 = sbr.rel (%p136) target = $region20
        $region19: #{tpu_custom_call.1} parent=11 // pred_region
          %s140 = ssub.s32 128, 128
          %141 = vsyncadd [#allocation6], %s140
          %s142 = sshll.u32 [#allocation7], 4
          %s143 = int_to_ptr.vmem [resolvable:$true] %s142
          %148 = dma.hbm_to_vmem [thread:$0]  %s2, 128, %s143, [#allocation6], 64, 64, 4
        $region20: #{tpu_custom_call.1} parent=11 // pred_fallthru
          _
      $region12: #{tpu_custom_call.1} parent=5 // pred_fallthru
        _
      %p149 = scmp.lt.s32.totalorder %s16, 8
      // Predicated region
      $region21: #{tpu_custom_call.1} parent=5 // pred_check
        %p150 = pneg %p149
      $region22: #{tpu_custom_call.1} parent=5 // pred_check_branch
        %152 = sbr.rel (%p150) target = $region24
      $region23: #{tpu_custom_call.1} parent=5 // pred_region
        // Predicated region
        $region25: #{tpu_custom_call.1} parent=23 // pred_check
          %p153 = pneg %p36
        $region26: #{tpu_custom_call.1} parent=23 // pred_check_branch
          %155 = sbr.rel (%p153) target = $region28
        $region27: #{tpu_custom_call.1} parent=23 // pred_region
          %s156 = sand.u32 %s26, 1
          %s157 = scalar_lea.sflag [#allocation3], %s156
          %s158 = sand.u32 %s26, 1
          %s159 = smul.addr %s158, 32
          %s160 = scalar_lea.vmem [#allocation2], %s159
          %s162 = ssub.s32 512, 512
          %163 = vsyncadd %s157, %s162
          %s164 = smul.addr %s16, 8
          %s165 = smul.addr %s164, 64
          %s166 = scalar_lea.hbm %s0, %s165
          %s167 = sshll.u32 %s160, 4
          %s168 = int_to_ptr.vmem [resolvable:$true] %s167
          %173 = dma.hbm_to_vmem [thread:$0]  %s166, 512, %s168, %s157, 128, 128, 8
        $region28: #{tpu_custom_call.1} parent=23 // pred_fallthru
          _
      $region24: #{tpu_custom_call.1} parent=5 // pred_fallthru
        _
      %p174 = scmp.le.s32.totalorder 1, %s16
      %p175 = scmp.lt.s32.totalorder %s16, 9
      %p176 = pnand %p174, %p175
      %p177 = pneg %p176
      // Predicated region
      $region29: #{tpu_custom_call.1} parent=5 // pred_check
        _
      $region30: #{tpu_custom_call.1} parent=5 // pred_check_branch
        %179 = sbr.rel (%p176) target = $region32
      $region31: #{tpu_custom_call.1} parent=5 // pred_region
        %s180 = ssub.s32 %s16, 1
        %s181 = sand.u32 %s29, 1
        %s182 = scalar_lea.sflag [#allocation3], %s181
        %s183 = sand.u32 %s29, 1
        %s184 = smul.addr %s183, 32
        %s185 = scalar_lea.vmem [#allocation2], %s184
        // Predicated region
        $region33: #{tpu_custom_call.1} parent=31 // pred_check
          %p186 = pneg %p42
        $region34: #{tpu_custom_call.1} parent=31 // pred_check_branch
          %188 = sbr.rel (%p186) target = $region36
        $region35: #{tpu_custom_call.1} parent=31 // pred_region
          %189 = dma.done %s182, 512
        $region36: #{tpu_custom_call.1} parent=31 // pred_fallthru
          _
        // Predicated region
        $region37: #{tpu_custom_call.1} parent=31 // pred_check
          %p190 = pneg %p63
        $region38: #{tpu_custom_call.1} parent=31 // pred_check_branch
          %192 = sbr.rel (%p190) target = $region40
        $region39: #{tpu_custom_call.1} parent=31 // pred_region
          %193 = dma.done [#allocation6], 64
        $region40: #{tpu_custom_call.1} parent=31 // pred_fallthru
          _
        // Predicated region
        $region41: #{tpu_custom_call.1} parent=31 // pred_check
          %p194 = pneg %p84
        $region42: #{tpu_custom_call.1} parent=31 // pred_check_branch
          %196 = sbr.rel (%p194) target = $region44
        $region43: #{tpu_custom_call.1} parent=31 // pred_region
          %197 = dma.done [#allocation6], 128
        $region44: #{tpu_custom_call.1} parent=31 // pred_fallthru
          _
        %s198 = sand.u32 %s29, 1
        %s199 = scalar_lea.sflag [#allocation3], %s198
        %s200 = sand.u32 %s29, 1
        %s201 = smul.addr %s200, 32
        %s202 = scalar_lea.vmem [#allocation2], %s201
        %p203 = pneg %p42
        %p204 = pneg %p39
        %p205 = pneg %p63
        %p206 = pneg %p60
        %p207 = pneg %p84
        %p208 = pneg %p81
        %p209 = pneg %p110
        %p210 = pneg %p107
        %s211 = sand.u32 %s97, 1
        %s212 = scalar_lea.sflag [#allocation4], %s211
        %s213 = sand.u32 %s97, 1
        %s214 = smul.addr %s213, 16
        %s215 = scalar_lea.vmem [#allocation8], %s214
        %v217 = vld [vmem:[%s185] sm:$0xff]
        %v218 = vld [vmem:[%s185 + $0x8] sm:$0xff]
        %v219 = vld [vmem:[%s185 + $0x10] sm:$0xff]
        %v220 = vld [vmem:[%s185 + $0x18] sm:$0xff]
        %v221 = vld [vmem:[#allocation5] sm:$0xf]
        %v226 = vunpack.c.l.b16 %v217
        %v227 = vunpack.c.h.b16 %v217
        %v228 = vunpack.c.l.b16 %v218
        %v229 = vunpack.c.h.b16 %v218
        %v230 = vunpack.c.l.b16 %v219
        %v231 = vunpack.c.h.b16 %v219
        %v232 = vunpack.c.l.b16 %v220
        %v233 = vunpack.c.h.b16 %v220
        %v234 = vpack.c.b16 %v228, %v226
        %v235 = vpack.c.b16 %v229, %v227
        %v236 = vpack.c.b16 %v232, %v230
        %v237 = vpack.c.b16 %v233, %v231
        %vm242 = vcmask 261120
        %v244 = vsel %vm242, %v221, 0
        %246 = vmatprep.subr.bf16.mxu0 0
        %247 = vmatpush1.bf16.msra.mxu0 0
        %248 = vmatprep.subr.bf16.mxu0 0
        %249 = vmatpush1.bf16.msra.mxu0 0
        %250 = vmatprep.subr.bf16.mxu0 0
        %251 = vmatpush1.bf16.msra.mxu0 0
        %252 = vmatprep.subr.bf16.mxu0 0
        %253 = vmatpush1.bf16.msra.mxu0 0
        %254 = vmatprep.subr.bf16.mxu0 0
        %255 = vmatpush1.bf16.msra.mxu0 0
        %256 = vmatprep.subr.bf16.mxu0 0
        %257 = vmatpush1.bf16.msra.mxu0 0
        %258 = vmatprep.subr.bf16.mxu0 %v237
        %259 = vmatpush1.bf16.msra.mxu0 %v236
        %260 = vmatprep.subr.bf16.mxu0 %v235
        %261 = vmatpush1.bf16.msra.mxu0 %v234
        %262 = vmatprep.subr.bf16.mxu0 0
        %263 = vmatpush2.bf16.msra.mxu0 0
        %264 = vmatprep.subr.bf16.mxu0 0
        %265 = vmatpush2.bf16.msra.mxu0 0
        %266 = vmatprep.subr.bf16.mxu0 0
        %267 = vmatpush2.bf16.msra.mxu0 0
        %268 = vmatprep.subr.bf16.mxu0 0
        %269 = vmatpush2.bf16.msra.mxu0 0
        %270 = vmatprep.subr.bf16.mxu0 0
        %271 = vmatpush2.bf16.msra.mxu0 0
        %272 = vmatprep.subr.bf16.mxu0 0
        %273 = vmatpush2.bf16.msra.mxu0 0
        %274 = vmatprep.subr.bf16.mxu0 0
        %275 = vmatpush2.bf16.msra.mxu0 0
        %276 = vmatprep.subr.bf16.mxu0 0
        %277 = vmatpush2.bf16.msra.mxu0 0
        %278 = vmatprep.mubr.bf16.mxu0 0
        %279 = vmatmul.mubr.bf16.gmra.mxu0 %v244
        %v280 = vpop.f32.mrf.mxu0
        %v281 = vadd.f32 0.0, %v280
        %v282 = vpop.f32.mrf.mxu0
        %v283 = vadd.f32 0.0, %v282
        %v284 = vpop.f32.mrf.mxu0
        %v285 = vpop.f32.mrf.mxu0
        %286 = vdwg.mxu0
        %v287 = vlaneseq
        %v288 = vand.u32 %v287, 127
        %v289 = vadd.s32 %v288, 128
        %vm290 = vcmp.lt.s32.totalorder %v288, 0
        %v291 = vsub.s32 0, %v288
        %v292 = vsel %vm290, %v291, %v288
        %v293 = vshrl.u32 %v292, 4
        %v294 = vand.u32 %v292, 15
        %v295 = vsub.s32 0, %v294
        %v296 = vsel %vm290, %v295, %v294
        %vm297 = vcmp.lt.s32.totalorder %v289, 0
        %v298 = vsub.s32 0, %v289
        %v299 = vsel %vm297, %v298, %v289
        %v300 = vshrl.u32 %v299, 4
        %v301 = vand.u32 %v299, 15
        %v302 = vsub.s32 0, %v301
        %v303 = vsel %vm297, %v302, %v301
        %vm304 = vcmp.ne.s32.totalorder %v296, 0
        %vm305 = vcmp.ne.s32.totalorder %v303, 0
        %vm306 = vcmp.lt.s32.totalorder %v296, 0
        %vm307 = vcmp.lt.s32.totalorder %v303, 0
        %vm308 = vmand %vm306, %vm304
        %vm309 = vmand %vm307, %vm305
        %v310 = vadd.s32 %v296, 16
        %v311 = vadd.s32 %v303, 16
        %v312 = vsel %vm308, %v310, %v296
        %v313 = vsel %vm309, %v311, %v303
        %vm314 = vcmp.ge.s32.totalorder %v288, 0
        %vm315 = vcmp.ge.s32.totalorder %v289, 0
        %vm316 = vcmp.ge.s32.totalorder %v288, 16
        %vm317 = vcmp.ge.s32.totalorder %v289, 16
        %vm318 = vcmp.lt.s32.totalorder %v288, 240
        %vm319 = vcmp.lt.s32.totalorder %v289, 240
        %vm320 = vcmp.ge.s32.totalorder %v312, 1
        %vm321 = vcmp.ge.s32.totalorder %v313, 1
        %vm322 = vcmp.le.s32.totalorder %v312, 14
        %vm323 = vcmp.le.s32.totalorder %v313, 14
        %324 = vrot.lane.b32.xlu0 %v281, 17
        %v325 = vpop.permute.xlu0 %324
        %326 = vrot.lane.b32.xlu0 %v283, 17
        %v327 = vpop.permute.xlu0 %326
        %vm328 = vcmp.lt.s32.totalorder %v288, 17
        %v329 = vsel %vm328, %v325, %v327
        %v330 = vsel %vm328, %v327, %v325
        %vm331 = vmand %vm316, %vm320
        %vm332 = vmand %vm317, %vm321
        %v333 = vsel %vm331, 1, 0
        %v334 = vsel %vm332, 1, 0
        %vm335 = vcmp.eq.s32.totalorder %v333, 1
        %vm336 = vcmp.eq.s32.totalorder %v334, 1
        %v337 = vsel %vm335, %v330, 0.0
        %v338 = vsel %vm336, %v329, 0.0
        %339 = vrot.lane.b32.xlu0 %v281, 16
        %v340 = vpop.permute.xlu0 %339
        %341 = vrot.lane.b32.xlu0 %v283, 16
        %v342 = vpop.permute.xlu0 %341
        %vm343 = vcmp.lt.s32.totalorder %v288, 16
        %v344 = vsel %vm343, %v340, %v342
        %v345 = vsel %vm343, %v342, %v340
        %vm346 = vmand %vm316, %vm314
        %vm347 = vmand %vm317, %vm315
        %v348 = vsel %vm346, 1, 0
        %v349 = vsel %vm347, 1, 0
        %vm350 = vcmp.eq.s32.totalorder %v348, 1
        %vm351 = vcmp.eq.s32.totalorder %v349, 1
        %v352 = vsel %vm350, %v345, 0.0
        %v353 = vsel %vm351, %v344, 0.0
        %354 = vrot.lane.b32.xlu0 %v281, 15
        %v355 = vpop.permute.xlu0 %354
        %356 = vrot.lane.b32.xlu0 %v283, 15
        %v357 = vpop.permute.xlu0 %356
        %vm358 = vcmp.lt.s32.totalorder %v288, 15
        %v359 = vsel %vm358, %v355, %v357
        %v360 = vsel %vm358, %v357, %v355
        %vm361 = vmand %vm316, %vm322
        %vm362 = vmand %vm317, %vm323
        %v363 = vsel %vm361, 1, 0
        %v364 = vsel %vm362, 1, 0
        %vm365 = vcmp.eq.s32.totalorder %v363, 1
        %vm366 = vcmp.eq.s32.totalorder %v364, 1
        %v367 = vsel %vm365, %v360, 0.0
        %v368 = vsel %vm366, %v359, 0.0
        %369 = vrot.lane.b32.xlu0 %v281, 1
        %v370 = vpop.permute.xlu0 %369
        %371 = vrot.lane.b32.xlu0 %v283, 1
        %v372 = vpop.permute.xlu0 %371
        %vm373 = vcmp.lt.s32.totalorder %v288, 1
        %v374 = vsel %vm373, %v370, %v372
        %v375 = vsel %vm373, %v372, %v370
        %vm376 = vmand %vm314, %vm320
        %vm377 = vmand %vm315, %vm321
        %v378 = vsel %vm376, 1, 0
        %v379 = vsel %vm377, 1, 0
        %vm380 = vcmp.eq.s32.totalorder %v378, 1
        %vm381 = vcmp.eq.s32.totalorder %v379, 1
        %v382 = vsel %vm380, %v375, 0.0
        %v383 = vsel %vm381, %v374, 0.0
        %384 = vrot.lane.b32.xlu0 %v281, 127
        %v385 = vpop.permute.xlu0 %384
        %386 = vrot.lane.b32.xlu0 %v283, 127
        %v387 = vpop.permute.xlu0 %386
        %vm388 = vcmp.lt.s32.totalorder %v288, 127
        %v389 = vsel %vm388, %v385, %v387
        %v390 = vsel %vm388, %v387, %v385
        %vm391 = vmand %vm314, %vm322
        %vm392 = vmand %vm315, %vm323
        %v393 = vsel %vm391, 1, 0
        %v394 = vsel %vm392, 1, 0
        %vm395 = vcmp.eq.s32.totalorder %v393, 1
        %vm396 = vcmp.eq.s32.totalorder %v394, 1
        %v397 = vsel %vm395, %v389, 0.0
        %v398 = vsel %vm396, %v390, 0.0
        %399 = vrot.lane.b32.xlu0 %v281, 113
        %v400 = vpop.permute.xlu0 %399
        %401 = vrot.lane.b32.xlu0 %v283, 113
        %v402 = vpop.permute.xlu0 %401
        %vm403 = vcmp.lt.s32.totalorder %v288, 113
        %v404 = vsel %vm403, %v400, %v402
        %v405 = vsel %vm403, %v402, %v400
        %vm406 = vmand %vm318, %vm320
        %vm407 = vmand %vm319, %vm321
        %v408 = vsel %vm406, 1, 0
        %v409 = vsel %vm407, 1, 0
        %vm410 = vcmp.eq.s32.totalorder %v408, 1
        %vm411 = vcmp.eq.s32.totalorder %v409, 1
        %v412 = vsel %vm410, %v404, 0.0
        %v413 = vsel %vm411, %v405, 0.0
        %414 = vrot.lane.b32.xlu0 %v281, 112
        %v415 = vpop.permute.xlu0 %414
        %416 = vrot.lane.b32.xlu0 %v283, 112
        %v417 = vpop.permute.xlu0 %416
        %vm418 = vcmp.lt.s32.totalorder %v288, 112
        %v419 = vsel %vm418, %v415, %v417
        %v420 = vsel %vm418, %v417, %v415
        %vm421 = vmand %vm318, %vm314
        %vm422 = vmand %vm319, %vm315
        %v423 = vsel %vm421, 1, 0
        %v424 = vsel %vm422, 1, 0
        %vm425 = vcmp.eq.s32.totalorder %v423, 1
        %vm426 = vcmp.eq.s32.totalorder %v424, 1
        %v427 = vsel %vm425, %v419, 0.0
        %v428 = vsel %vm426, %v420, 0.0
        %429 = vrot.lane.b32.xlu0 %v281, 111
        %v430 = vpop.permute.xlu0 %429
        %431 = vrot.lane.b32.xlu0 %v283, 111
        %v432 = vpop.permute.xlu0 %431
        %vm433 = vcmp.lt.s32.totalorder %v288, 111
        %v434 = vsel %vm433, %v430, %v432
        %v435 = vsel %vm433, %v432, %v430
        %vm436 = vmand %vm318, %vm322
        %vm437 = vmand %vm319, %vm323
        %v438 = vsel %vm436, 1, 0
        %v439 = vsel %vm437, 1, 0
        %vm440 = vcmp.eq.s32.totalorder %v438, 1
        %vm441 = vcmp.eq.s32.totalorder %v439, 1
        %v442 = vsel %vm440, %v434, 0.0
        %v443 = vsel %vm441, %v435, 0.0
        %v444 = vpack.c.bf16 %v352, %v337
        %v445 = vpack.c.bf16 %v353, %v338
        %v446 = vpack.c.bf16 %v382, %v367
        %v447 = vpack.c.bf16 %v383, %v368
        %v448 = vpack.c.bf16 %v397, %v281
        %v449 = vpack.c.bf16 %v398, %v283
        %v450 = vpack.c.bf16 %v427, %v412
        %v451 = vpack.c.bf16 %v428, %v413
        %v452 = vpack.c.bf16 %v442, %v442
        %v453 = vpack.c.bf16 %v443, %v443
        %v454 = vld [vmem:[#allocation7] sm:$0xf]
        %v455 = vld [vmem:[#allocation7 + $0x4] sm:$0xf]
        %v458 = vunpack.c.l.b16 %v454
        %v459 = vunpack.c.l.b16 %v455
        %v460 = vpack.c.b16 %v459, %v458
        %vm461 = vcmask 588800
        %v463 = vsel %vm461, %v460, 0
        %vm465 = vcmask 1043456
        %v467 = vsel %vm465, %v452, 0
        %v470 = vsel %vm465, %v453, 0
        %472 = vmatprep.subr.bf16.mxu0 0
        %473 = vmatpush1.bf16.msra.mxu0 0
        %474 = vmatprep.subr.bf16.mxu0 0
        %475 = vmatpush1.bf16.msra.mxu0 0
        %476 = vmatprep.subr.bf16.mxu0 0
        %477 = vmatpush1.bf16.msra.mxu0 0
        %478 = vmatprep.subr.bf16.mxu0 %v470
        %479 = vmatpush1.bf16.msra.mxu0 %v467
        %480 = vmatprep.subr.bf16.mxu0 %v451
        %481 = vmatpush1.bf16.msra.mxu0 %v450
        %482 = vmatprep.subr.bf16.mxu0 %v449
        %483 = vmatpush1.bf16.msra.mxu0 %v448
        %484 = vmatprep.subr.bf16.mxu0 %v447
        %485 = vmatpush1.bf16.msra.mxu0 %v446
        %486 = vmatprep.subr.bf16.mxu0 %v445
        %487 = vmatpush1.bf16.msra.mxu0 %v444
        %488 = vmatprep.subr.bf16.mxu0 0
        %489 = vmatpush2.bf16.msra.mxu0 0
        %490 = vmatprep.subr.bf16.mxu0 0
        %491 = vmatpush2.bf16.msra.mxu0 0
        %492 = vmatprep.subr.bf16.mxu0 0
        %493 = vmatpush2.bf16.msra.mxu0 0
        %494 = vmatprep.subr.bf16.mxu0 0
        %495 = vmatpush2.bf16.msra.mxu0 0
        %496 = vmatprep.subr.bf16.mxu0 0
        %497 = vmatpush2.bf16.msra.mxu0 0
        %498 = vmatprep.subr.bf16.mxu0 0
        %499 = vmatpush2.bf16.msra.mxu0 0
        %500 = vmatprep.subr.bf16.mxu0 0
        %501 = vmatpush2.bf16.msra.mxu0 0
        %502 = vmatprep.subr.bf16.mxu0 0
        %503 = vmatpush2.bf16.msra.mxu0 0
        %504 = vmatprep.mubr.bf16.mxu0 0
        %505 = vmatmul.mubr.bf16.gmra.mxu0 %v463
        %v506 = vpop.f32.mrf.mxu0
        %v507 = vadd.f32 0.0, %v506
        %v508 = vpop.f32.mrf.mxu0
        %v509 = vadd.f32 0.0, %v508
        %v510 = vpop.f32.mrf.mxu0
        %v511 = vadd.f32 0.0, %v510
        %v512 = vpop.f32.mrf.mxu0
        %v513 = vadd.f32 0.0, %v512
        %514 = vdwg.mxu0
        %v515 = vpack.c.bf16 %v511, %v507
        %v516 = vpack.c.bf16 %v513, %v509
        %v519 = vunpack.c.l.b16 %v515
        %v520 = vunpack.c.l.b16 %v516
        %v521 = vunpack.c.h.b16 %v515
        %v522 = vunpack.c.h.b16 %v516
        %v523 = vpack.c.b16 %v520, %v519
        %v524 = vpack.c.b16 %v522, %v521
        %527 = vst [vmem:[%s215] sm:$0xff] %v523
        %528 = vst [vmem:[%s215 + $0x8] sm:$0xff] %v524
        %s529 = sand.u32 %s97, 1
        %s530 = scalar_lea.sflag [#allocation4], %s529
        %s531 = sand.u32 %s97, 1
        %s532 = smul.addr %s531, 16
        %s533 = scalar_lea.vmem [#allocation8], %s532
        // Predicated region
        $region45: #{tpu_custom_call.1} parent=31 // pred_check
          %p534 = pneg %p107
        $region46: #{tpu_custom_call.1} parent=31 // pred_check_branch
          %536 = sbr.rel (%p534) target = $region48
        $region47: #{tpu_custom_call.1} parent=31 // pred_region
          %s538 = ssub.s32 256, 256
          %539 = vsyncadd %s530, %s538
          %s540 = smul.addr %s21, 4
          %s541 = smul.addr %s540, 64
          %s542 = scalar_lea.hbm %s3, %s541
          %s543 = sshll.u32 %s533, 4
          %s544 = int_to_ptr.vmem [resolvable:$true] %s543
          %549 = dma.vmem_to_hbm [thread:$0]  %s544, 256, %s542, %s530, 128, 128, 8
        $region48: #{tpu_custom_call.1} parent=31 // pred_fallthru
          _
      $region32: #{tpu_custom_call.1} parent=5 // pred_fallthru
        _
      %p550 = scmp.le.s32.totalorder 2, %s16
      // Predicated region
      $region49: #{tpu_custom_call.1} parent=5 // pred_check
        %p551 = pneg %p550
      $region50: #{tpu_custom_call.1} parent=5 // pred_check_branch
        %553 = sbr.rel (%p551) target = $region52
      $region51: #{tpu_custom_call.1} parent=5 // pred_region
        %s554 = ssub.s32 %s16, 2
        // Predicated region
        $region53: #{tpu_custom_call.1} parent=51 // pred_check
          %p555 = pneg %p113
        $region54: #{tpu_custom_call.1} parent=51 // pred_check_branch
          %557 = sbr.rel (%p555) target = $region56
        $region55: #{tpu_custom_call.1} parent=51 // pred_region
          %s558 = sand.u32 %s98, 1
          %s559 = scalar_lea.sflag [#allocation4], %s558
          %s560 = sand.u32 %s98, 1
          %s561 = smul.addr %s560, 16
          %s562 = scalar_lea.vmem [#allocation8], %s561
          %563 = dma.done %s559, 256
        $region56: #{tpu_custom_call.1} parent=51 // pred_fallthru
          _
      $region52: #{tpu_custom_call.1} parent=5 // pred_fallthru
        _
    $region6: #{tpu_custom_call.1} parent=1 // loop_footer
      %s20 = sadd.s32 1, %s16
    $region7: #{tpu_custom_call.1} parent=1 // loop_footer_branch
      %15 = sbr.rel target = $region3
    $region8: #{tpu_custom_call.1} parent=1 // loop_exit
      _
    %564 = vsyncpa [#allocation3], 1
    %s565 = scalar_lea.sflag [#allocation3], 1
    %566 = vsyncpa %s565, 1
    %567 = vsyncpa [#allocation6], 1
    %568 = vsyncpa [#allocation4], 1
    %s569 = scalar_lea.sflag [#allocation4], 1
    %570 = vsyncpa %s569, 1

</llo_original>
